<compile_context>
chip_gen: v6e
topology: v6e:2x2x1
jax: 0.10.0
libtpu: 0.0.40
codegen_flags: <defaults>
</compile_context>

<pallas_src>
import functools

import jax
import jax.numpy as jnp
from jax.experimental import pallas as pl
from jax.experimental.pallas import tpu as pltpu


def _round_up(n, m):
    return (n + m - 1) // m * m


def dnn_kernel(x_ref, w1t_ref, w2t_ref, o_ref, *, num_classes):
    # x_ref  : (bt, 784)  f32   input tile (cast to bf16 here, in-kernel)
    # w1t_ref: (784, Wp)  bf16  fc1 weight, transposed + lane-padded
    # w2t_ref: (Wp, Cp)   bf16  fc2 weight, transposed + lane-padded
    # o_ref  : (bt, Cp)   f32   softmax output tile (lane-dense, Cp mult of 128)
    x = x_ref[...].astype(jnp.bfloat16)

    # fc1 (no bias) + ReLU: bf16 MXU matmul, f32 accumulation, f32 ReLU.
    h = jnp.dot(x, w1t_ref[...], preferred_element_type=jnp.float32)
    h = jnp.maximum(h, 0.0).astype(jnp.bfloat16)  # bf16 operand for 2nd MXU pass

    # fc2 (no bias)
    logits = jnp.dot(h, w2t_ref[...], preferred_element_type=jnp.float32)

    # Mask padded class lanes so exp(padded) underflows to exactly 0.
    col = jax.lax.broadcasted_iota(jnp.int32, logits.shape, dimension=1)
    logits = jnp.where(col < num_classes, logits, jnp.float32(-1e30))

    # Numerically stable softmax over dim=1 (all f32).  Exact divide so row
    # sums are 1 to f32 rounding (the approx EUP reciprocal was the source of
    # the previous row-sum failure; this kernel is not EUP-bound anyway).
    m = jnp.max(logits, axis=-1, keepdims=True)
    e = jnp.exp(logits - m)
    denom = jnp.sum(e, axis=-1, keepdims=True)
    o_ref[...] = (e / denom).astype(o_ref.dtype)


def prepare_weights(w1, w2):
    """One-time transpose / zero-pad / bf16 cast of PyTorch-layout weights.

    w1: (width, 784), w2: (10, width)
      -> w1t: (784, Wp) bf16, w2t: (Wp, Cp) bf16, Wp/Cp rounded up to 128.
    Zero padding is exact: padded hidden units are relu(0)=0 and padded class
    lanes are masked out inside the kernel before the softmax.
    """
    width, in_dim = w1.shape
    n_cls = w2.shape[0]
    wp = _round_up(width, 128)
    cp = _round_up(n_cls, 128)
    w1t = jnp.zeros((in_dim, wp), jnp.bfloat16)
    w1t = w1t.at[:, :width].set(jnp.asarray(w1, jnp.float32).T.astype(jnp.bfloat16))
    w2t = jnp.zeros((wp, cp), jnp.bfloat16)
    w2t = w2t.at[:width, :n_cls].set(jnp.asarray(w2, jnp.float32).T.astype(jnp.bfloat16))
    return w1t, w2t, n_cls


def _pick_batch_tile(B, max_batch_tile, min_grid_steps):
    # >= min_grid_steps grid steps when the batch allows (v7x: 2 TensorCores),
    # otherwise as few steps as possible; sublane dim must be a multiple of 8.
    bt = _round_up(max(pl.cdiv(B, max(min_grid_steps, 1)), 8), 8)
    bt = min(bt, max_batch_tile, _round_up(B, 8))
    return bt


def dnn_forward(x_nchw, w1t, w2t, n_cls, *, max_batch_tile=1024, min_grid_steps=2):
    """x_nchw: (B, 1, 28, 28) f32; w1t/w2t/n_cls from prepare_weights."""
    B = x_nchw.shape[0]
    x = jnp.asarray(x_nchw).reshape(B, -1)  # flatten(x, 1); stays f32, cast in-kernel
    in_dim = x.shape[1]
    wp = w1t.shape[1]
    cp = w2t.shape[1]

    bt = _pick_batch_tile(B, max_batch_tile, min_grid_steps)
    grid = (pl.cdiv(B, bt),)  # ragged last block handled by Pallas (no jnp.pad)

    out = pl.pallas_call(
        functools.partial(dnn_kernel, num_classes=n_cls),
        out_shape=jax.ShapeDtypeStruct((B, cp), jnp.float32),
        grid_spec=pltpu.PrefetchScalarGridSpec(
            num_scalar_prefetch=0,
            grid=grid,
            in_specs=[
                pl.BlockSpec((bt, in_dim), lambda i: (i, 0)),  # x batch tile
                # Constant index_map -> weight blocks stay VMEM-resident across
                # the grid (bf16 (784,128)+(128,128) ~ 230 KiB here).
                pl.BlockSpec((in_dim, wp), lambda i: (0, 0)),  # full W1^T
                pl.BlockSpec((wp, cp), lambda i: (0, 0)),      # full W2^T
            ],
            out_specs=pl.BlockSpec((bt, cp), lambda i: (i, 0)),
        ),
        compiler_params=pltpu.CompilerParams(
            # batch axis parallel -> grid steps shard over TCs (v7x megacore)
            dimension_semantics=("parallel",),
        ),
    )(x, w1t, w2t)

    # Only the padded class lanes need stripping (batch was never padded).
    # Downstream consumers that can ignore lanes >= n_cls may take `out` as-is.
    return out[:, :n_cls]


def reference_forward(x_nchw, w1, w2):
    x = x_nchw.reshape(x_nchw.shape[0], -1)
    h = jnp.maximum(x @ w1.T, 0.0)
    logits = h @ w2.T
    return jax.nn.softmax(logits, axis=1)


if __name__ == "__main__":
    B, width, in_dim, n_cls = 16, 32, 784, 10

    key = jax.random.PRNGKey(0)
    kx, k1, k2 = jax.random.split(key, 3)

    # MNIST-like NCHW input (small batch for the smoke test).
    x = jax.random.normal(kx, (B, 1, 28, 28), dtype=jnp.float32)

    # Deterministic synthetic weights (PyTorch Linear layout: (out, in)).
    w1 = jax.random.normal(k1, (width, in_dim), dtype=jnp.float32) * (1.0 / jnp.sqrt(in_dim))
    w2 = jax.random.normal(k2, (n_cls, width), dtype=jnp.float32) * (1.0 / jnp.sqrt(width))

    # One-time weight prep (transpose + 128-pad + bf16 cast).
    w1t, w2t, n_out = prepare_weights(w1, w2)

    out = dnn_forward(x, w1t, w2t, n_out)  # 2 grid steps at B=16 (bt=8)
    out = jax.block_until_ready(out)

    ref = reference_forward(x, w1, w2)

    assert out.shape == (B, n_cls)
    # bf16 matmul operands (f32 accumulation) -> compare to the pure-f32
    # reference with a bf16-appropriate tolerance.
    assert jnp.allclose(out, ref, atol=2e-2, rtol=2e-2), "mismatch vs reference"
    # Exact f32 softmax divide -> rows sum to 1 within f32 rounding.
    assert jnp.allclose(jnp.sum(out, axis=1), 1.0, atol=1e-3), "softmax rows must sum to 1"

    print("KERNEL_OK")
</pallas_src>

<mosaic_0001>
module attributes {stable_mosaic.version = 11 : i64} {
  func.func @dnn_kernel(%arg0: i32, %arg1: memref<8x784xf32, #tpu.memory_space<vmem>>, %arg2: memref<784x128xbf16, #tpu.memory_space<vmem>>, %arg3: memref<128x128xbf16, #tpu.memory_space<vmem>>, %arg4: memref<8x128xf32, #tpu.memory_space<vmem>>) attributes {dimension_semantics = [#tpu.dimension_semantics<parallel>], iteration_bounds = array<i64: 2>, scalar_prefetch = 0 : i64, scratch_operands = 0 : i64, tpu.core_type = #tpu.core_type<tc>, window_params = [{transform_indices = @transform_0, window_bounds = array<i64: 8, 784>}, {pipeline_mode = #tpu.pipeline_mode<synchronous>, transform_indices = @transform_1, window_bounds = array<i64: 784, 128>}, {pipeline_mode = #tpu.pipeline_mode<synchronous>, transform_indices = @transform_2, window_bounds = array<i64: 128, 128>}, {transform_indices = @transform_3, window_bounds = array<i64: 8, 128>}]} {
    %c0 = arith.constant 0 : index
    %c0_0 = arith.constant 0 : index
    %0 = vector.load %arg1[%c0, %c0_0] : memref<8x784xf32, #tpu.memory_space<vmem>>, vector<8x784xf32>
    %1 = arith.truncf %0 : vector<8x784xf32> to vector<8x784xbf16>
    %c0_1 = arith.constant 0 : index
    %c0_2 = arith.constant 0 : index
    %2 = vector.load %arg2[%c0_1, %c0_2] : memref<784x128xbf16, #tpu.memory_space<vmem>>, vector<784x128xbf16>
    %cst = arith.constant dense<0.000000e+00> : vector<8x128xf32>
    %3 = tpu.matmul %1, %2, %cst {dimension_numbers = #tpu.dot_dimension_numbers<[1], [0], [0], [1], [0, 0, 1, 1], [], []>} : vector<8x784xbf16>, vector<784x128xbf16>, vector<8x128xf32> -> vector<8x128xf32>
    %cst_3 = arith.constant 0.000000e+00 : f32
    %4 = vector.broadcast %cst_3 : f32 to vector<8x128xf32>
    %5 = arith.maximumf %3, %4 : vector<8x128xf32>
    %6 = arith.truncf %5 : vector<8x128xf32> to vector<8x128xbf16>
    %c0_4 = arith.constant 0 : index
    %c0_5 = arith.constant 0 : index
    %7 = vector.load %arg3[%c0_4, %c0_5] : memref<128x128xbf16, #tpu.memory_space<vmem>>, vector<128x128xbf16>
    %cst_6 = arith.constant dense<0.000000e+00> : vector<8x128xf32>
    %8 = tpu.matmul %6, %7, %cst_6 {dimension_numbers = #tpu.dot_dimension_numbers<[1], [0], [0], [1], [0, 0, 1, 1], [], []>} : vector<8x128xbf16>, vector<128x128xbf16>, vector<8x128xf32> -> vector<8x128xf32>
    %9 = tpu.iota {dimensions = array<i32: 1>} : vector<8x128xi32>
    %c10_i32 = arith.constant 10 : i32
    %10 = vector.broadcast %c10_i32 : i32 to vector<8x128xi32>
    %11 = arith.cmpi slt, %9, %10 : vector<8x128xi32>
    %cst_7 = arith.constant -1.000000e+30 : f32
    %12 = vector.broadcast %cst_7 : f32 to vector<8x128xf32>
    %13 = arith.select %11, %8, %12 : vector<8x128xi1>, vector<8x128xf32>
    %cst_8 = arith.constant dense<0xFF800000> : vector<8xf32>
    %14 = vector.multi_reduction <maximumf>, %13, %cst_8 [1] : vector<8x128xf32> to vector<8xf32>
    %15 = vector.shape_cast %14 : vector<8xf32> to vector<8x1xf32>
    %16 = vector.broadcast %15 : vector<8x1xf32> to vector<8x128xf32>
    %17 = arith.subf %13, %16 : vector<8x128xf32>
    %18 = math.exp %17 : vector<8x128xf32>
    %cst_9 = arith.constant dense<0.000000e+00> : vector<8xf32>
    %19 = vector.multi_reduction <add>, %18, %cst_9 [1] : vector<8x128xf32> to vector<8xf32>
    %20 = vector.shape_cast %19 : vector<8xf32> to vector<8x1xf32>
    %21 = vector.broadcast %20 : vector<8x1xf32> to vector<8x128xf32>
    %22 = arith.divf %18, %21 : vector<8x128xf32>
    %c0_10 = arith.constant 0 : index
    %c0_11 = arith.constant 0 : index
    %23 = vector.load %arg4[%c0_10, %c0_11] : memref<8x128xf32, #tpu.memory_space<vmem>>, vector<8x128xf32>
    tpu.vector_store %arg4[%c0_10, %c0_11], %22 {strides = array<i32>} : memref<8x128xf32, #tpu.memory_space<vmem>>, vector<8x128xf32>,
    return
  }
  func.func @transform_0(%arg0: i32) -> (i32, i32) {
    %c0_i32 = arith.constant 0 : i32
    %c0_i32_0 = arith.constant 0 : i32
    return %arg0, %c0_i32 : i32, i32
  }
  func.func @transform_1(%arg0: i32) -> (i32, i32) {
    %c0_i32 = arith.constant 0 : i32
    %c0_i32_0 = arith.constant 0 : i32
    %c0_i32_1 = arith.constant 0 : i32
    return %c0_i32, %c0_i32_0 : i32, i32
  }
  func.func @transform_2(%arg0: i32) -> (i32, i32) {
    %c0_i32 = arith.constant 0 : i32
    %c0_i32_0 = arith.constant 0 : i32
    %c0_i32_1 = arith.constant 0 : i32
    return %c0_i32, %c0_i32_0 : i32, i32
  }
  func.func @transform_3(%arg0: i32) -> (i32, i32) {
    %c0_i32 = arith.constant 0 : i32
    %c0_i32_0 = arith.constant 0 : i32
    return %arg0, %c0_i32 : i32, i32
  }
}

</mosaic_0001>

<llo_original>
// kernel: tpu_custom_call.1
$region0: #{tpu_custom_call.1}
  #allocation0 [shape = 'u32[]', space=smem, size = 0x4, offset = 0x4, fixed_abs, tag = 'smem constant byte address 0x4 - core index']
  #allocation1 [shape = 'u32[144,128]{1,0:T(1,128)}', space=vmem, size = 0x12000, scoped, tag = 'internal scratch']
  %s0 = inlined_call_operand.hbm [shape: f32[16,784], index: 0, kind: input, shape index: {}]
  %s1 = inlined_call_operand.hbm [shape: bf16[784,128], index: 1, kind: input, shape index: {}]
  %s2 = inlined_call_operand.hbm [shape: bf16[128,128], index: 2, kind: input, shape index: {}]
  %s3 = inlined_call_operand.hbm [shape: f32[16,128], index: 3, kind: output, shape index: {}]
  %s4 = sld [smem:[#allocation0]]
  $region57: #{tpu_custom_call.1} parent=0
    _
  %s6 = ssub.s32 1, %s4
  %s7 = scalar_select 0, %s6, %s4
  $region1: #{tpu_custom_call.1} parent=0
    #allocation2 [shape = 'u8[57344]{0}', space=vmem, size = 0xe000, scoped, tag = 'input window, operand 0']
    #allocation3 [shape = 's32[2]{0}', space=sflag, size = 0x8, scoped, tag = 'scoped memory for tpu_custom_call.1']
    #allocation4 [shape = 's32[2]{0}', space=sflag, size = 0x8, scoped, tag = 'scoped memory for tpu_custom_call.1']
    #allocation5 [shape = 'u8[200704]{0}', space=vmem, size = 0x31000, scoped, tag = 'input window, operand 1, single buffered']
    #allocation6 [shape = 's32[1]{0}', space=sflag, size = 0x4, scoped, tag = 'scoped memory for tpu_custom_call.1']
    #allocation7 [shape = 'u8[32768]{0}', space=vmem, size = 0x8000, scoped, tag = 'input window, operand 2, single buffered']
    #allocation8 [shape = 'u8[8192]{0}', space=vmem, size = 0x2000, scoped, tag = 'output window, operand 0']
    %8 = vsyncpa [#allocation3], 0
    %s9 = scalar_lea.sflag [#allocation3], 1
    %10 = vsyncpa %s9, 0
    %11 = vsyncpa [#allocation6], 0
    %12 = vsyncpa [#allocation4], 0
    %s13 = scalar_lea.sflag [#allocation4], 1
    %14 = vsyncpa %s13, 0
    loop: start=0, step=1, limit=4
    $region2: #{tpu_custom_call.1} parent=1 // loop_pre_header
      _
    $region3: #{tpu_custom_call.1} parent=1 // loop_header
      %s16 = sphi 0, %s20
      %p17 = scmp.ge.s32.totalorder %s16, 4
      %s26 = sphi 0, %s28
      %s29 = sphi 0, %s26
      %s30 = sphi 0, %s29
      %s46 = sphi 0, %s30
      %s50 = sphi 0, %s50
      %s52 = sphi 0, %s50
      %s53 = sphi 0, %s52
      %s67 = sphi 0, %s53
      %s71 = sphi 0, %s71
      %s73 = sphi 0, %s71
      %s74 = sphi 0, %s73
      %s88 = sphi 0, %s74
      %s94 = sphi 0, %s96
      %s97 = sphi 0, %s94
      %s98 = sphi 0, %s97
      %s114 = sphi 0, %s98
    $region4: #{tpu_custom_call.1} parent=1 // loop_header_branch
      %19 = sbr.rel (%p17) target = $region8
    $region5: #{tpu_custom_call.1} parent=1 // loop_body
      %s21 = ssub.s32 %s16, 1
      %s22 = ssub.s32 %s16, 2
      %s23 = sadd.s32 %s16, 1
      %s24 = ssub.s32 %s16, %s23
      %p25 = scmp.eq.s32.totalorder %s24, 0
      %s27 = sadd.s32 %s26, 1
      %s28 = scalar_select %p25, %s26, %s27
      %p31 = pneg %p25
      %p32 = scmp.eq.s32.totalorder %s16, 1
      %p33 = por %p31, %p32
      %p34 = scmp.ne.s32.totalorder %s26, %s29
      %p35 = scmp.eq.s32.totalorder %s16, 0
      %p36 = por %p34, %p35
      %p37 = scmp.ne.s32.totalorder %s26, %s29
      %p38 = scmp.eq.s32.totalorder %s21, 1
      %p39 = por %p37, %p38
      %p40 = scmp.ne.s32.totalorder %s29, %s30
      %p41 = scmp.eq.s32.totalorder %s21, 0
      %p42 = por %p40, %p41
      %p43 = scmp.ne.s32.totalorder %s29, %s30
      %p44 = scmp.eq.s32.totalorder %s22, 1
      %p45 = por %p43, %p44
      %p47 = scmp.ne.s32.totalorder %s30, %s46
      %p48 = scmp.eq.s32.totalorder %s22, 0
      %p49 = por %p47, %p48
      %s51 = sadd.s32 %s50, 1
      %p54 = scmp.eq.s32.totalorder %s16, 1
      %p55 = scmp.ne.s32.totalorder %s50, %s52
      %p56 = scmp.eq.s32.totalorder %s16, 0
      %p57 = por %p55, %p56
      %p58 = scmp.ne.s32.totalorder %s50, %s52
      %p59 = scmp.eq.s32.totalorder %s21, 1
      %p60 = por %p58, %p59
      %p61 = scmp.ne.s32.totalorder %s52, %s53
      %p62 = scmp.eq.s32.totalorder %s21, 0
      %p63 = por %p61, %p62
      %p64 = scmp.ne.s32.totalorder %s52, %s53
      %p65 = scmp.eq.s32.totalorder %s22, 1
      %p66 = por %p64, %p65
      %p68 = scmp.ne.s32.totalorder %s53, %s67
      %p69 = scmp.eq.s32.totalorder %s22, 0
      %p70 = por %p68, %p69
      %s72 = sadd.s32 %s71, 1
      %p75 = scmp.eq.s32.totalorder %s16, 1
      %p76 = scmp.ne.s32.totalorder %s71, %s73
      %p77 = scmp.eq.s32.totalorder %s16, 0
      %p78 = por %p76, %p77
      %p79 = scmp.ne.s32.totalorder %s71, %s73
      %p80 = scmp.eq.s32.totalorder %s21, 1
      %p81 = por %p79, %p80
      %p82 = scmp.ne.s32.totalorder %s73, %s74
      %p83 = scmp.eq.s32.totalorder %s21, 0
      %p84 = por %p82, %p83
      %p85 = scmp.ne.s32.totalorder %s73, %s74
      %p86 = scmp.eq.s32.totalorder %s22, 1
      %p87 = por %p85, %p86
      %p89 = scmp.ne.s32.totalorder %s74, %s88
      %p90 = scmp.eq.s32.totalorder %s22, 0
      %p91 = por %p89, %p90
      %s92 = ssub.s32 %s16, %s23
      %p93 = scmp.eq.s32.totalorder %s92, 0
      %s95 = sadd.s32 %s94, 1
      %s96 = scalar_select %p93, %s94, %s95
      %p99 = pneg %p93
      %p100 = scmp.eq.s32.totalorder %s16, 1
      %p101 = por %p99, %p100
      %p102 = scmp.ne.s32.totalorder %s94, %s97
      %p103 = scmp.eq.s32.totalorder %s16, 0
      %p104 = por %p102, %p103
      %p105 = scmp.ne.s32.totalorder %s94, %s97
      %p106 = scmp.eq.s32.totalorder %s21, 1
      %p107 = por %p105, %p106
      %p108 = scmp.ne.s32.totalorder %s97, %s98
      %p109 = scmp.eq.s32.totalorder %s21, 0
      %p110 = por %p108, %p109
      %p111 = scmp.ne.s32.totalorder %s97, %s98
      %p112 = scmp.eq.s32.totalorder %s22, 1
      %p113 = por %p111, %p112
      %p115 = scmp.ne.s32.totalorder %s98, %s114
      %p116 = scmp.eq.s32.totalorder %s22, 0
      %p117 = por %p115, %p116
      %p118 = scmp.le.s32.totalorder 1, %s16
      %p119 = scmp.lt.s32.totalorder %s16, 3
      %p120 = pnand %p118, %p119
      %p121 = pneg %p120
      // Predicated region
      $region9: #{tpu_custom_call.1} parent=5 // pred_check
        _
      $region10: #{tpu_custom_call.1} parent=5 // pred_check_branch
        %123 = sbr.rel (%p120) target = $region12
      $region11: #{tpu_custom_call.1} parent=5 // pred_region
        %s124 = ssub.s32 %s16, 1
        // Predicated region
        $region13: #{tpu_custom_call.1} parent=11 // pred_check
          %p125 = pneg %p63
        $region14: #{tpu_custom_call.1} parent=11 // pred_check_branch
          %127 = sbr.rel (%p125) target = $region16
        $region15: #{tpu_custom_call.1} parent=11 // pred_region
          %s129 = ssub.s32 6272, 6272
          %130 = vsyncadd [#allocation6], %s129
          %s131 = sshll.u32 [#allocation5], 4
          %s132 = int_to_ptr.vmem [resolvable:$true] %s131
          %137 = dma.hbm_to_vmem [thread:$0]  %s1, 6272, %s132, [#allocation6], 64, 64, 4
        $region16: #{tpu_custom_call.1} parent=11 // pred_fallthru
          _
        // Predicated region
        $region17: #{tpu_custom_call.1} parent=11 // pred_check
          %p138 = pneg %p84
        $region18: #{tpu_custom_call.1} parent=11 // pred_check_branch
          %140 = sbr.rel (%p138) target = $region20
        $region19: #{tpu_custom_call.1} parent=11 // pred_region
          %s142 = ssub.s32 1024, 1024
          %143 = vsyncadd [#allocation6], %s142
          %s144 = sshll.u32 [#allocation7], 4
          %s145 = int_to_ptr.vmem [resolvable:$true] %s144
          %150 = dma.hbm_to_vmem [thread:$0]  %s2, 1024, %s145, [#allocation6], 64, 64, 4
        $region20: #{tpu_custom_call.1} parent=11 // pred_fallthru
          _
      $region12: #{tpu_custom_call.1} parent=5 // pred_fallthru
        _
      %p151 = scmp.lt.s32.totalorder %s16, 2
      // Predicated region
      $region21: #{tpu_custom_call.1} parent=5 // pred_check
        %p152 = pneg %p151
      $region22: #{tpu_custom_call.1} parent=5 // pred_check_branch
        %154 = sbr.rel (%p152) target = $region24
      $region23: #{tpu_custom_call.1} parent=5 // pred_region
        // Predicated region
        $region25: #{tpu_custom_call.1} parent=23 // pred_check
          %p155 = pneg %p36
        $region26: #{tpu_custom_call.1} parent=23 // pred_check_branch
          %157 = sbr.rel (%p155) target = $region28
        $region27: #{tpu_custom_call.1} parent=23 // pred_region
          %s158 = sand.u32 %s26, 1
          %s159 = scalar_lea.sflag [#allocation3], %s158
          %s160 = sand.u32 %s26, 1
          %s161 = smul.addr %s160, 56
          %s162 = scalar_lea.vmem [#allocation2], %s161
          %s164 = ssub.s32 896, 896
          %165 = vsyncadd %s159, %s164
          %s166 = smul.addr %s16, 7
          %s167 = smul.addr %s166, 128
          %s168 = scalar_lea.hbm %s0, %s167
          %s170 = sshll.u32 %s162, 4
          %s171 = int_to_ptr.vmem [resolvable:$true] %s170
          %173 = dma.hbm_to_vmem [thread:$0]  %s168, 896, %s171, %s159
        $region28: #{tpu_custom_call.1} parent=23 // pred_fallthru
          _
      $region24: #{tpu_custom_call.1} parent=5 // pred_fallthru
        _
      %p174 = scmp.le.s32.totalorder 1, %s16
      %p175 = scmp.lt.s32.totalorder %s16, 3
      %p176 = pnand %p174, %p175
      %p177 = pneg %p176
      // Predicated region
      $region29: #{tpu_custom_call.1} parent=5 // pred_check
        _
      $region30: #{tpu_custom_call.1} parent=5 // pred_check_branch
        %179 = sbr.rel (%p176) target = $region32
      $region31: #{tpu_custom_call.1} parent=5 // pred_region
        %s180 = ssub.s32 %s16, 1
        %s181 = sand.u32 %s29, 1
        %s182 = scalar_lea.sflag [#allocation3], %s181
        %s183 = sand.u32 %s29, 1
        %s184 = smul.addr %s183, 56
        %s185 = scalar_lea.vmem [#allocation2], %s184
        // Predicated region
        $region33: #{tpu_custom_call.1} parent=31 // pred_check
          %p186 = pneg %p42
        $region34: #{tpu_custom_call.1} parent=31 // pred_check_branch
          %188 = sbr.rel (%p186) target = $region36
        $region35: #{tpu_custom_call.1} parent=31 // pred_region
          %189 = dma.done %s182, 896
        $region36: #{tpu_custom_call.1} parent=31 // pred_fallthru
          _
        // Predicated region
        $region37: #{tpu_custom_call.1} parent=31 // pred_check
          %p190 = pneg %p63
        $region38: #{tpu_custom_call.1} parent=31 // pred_check_branch
          %192 = sbr.rel (%p190) target = $region40
        $region39: #{tpu_custom_call.1} parent=31 // pred_region
          %193 = dma.done [#allocation6], 6272
        $region40: #{tpu_custom_call.1} parent=31 // pred_fallthru
          _
        // Predicated region
        $region41: #{tpu_custom_call.1} parent=31 // pred_check
          %p194 = pneg %p84
        $region42: #{tpu_custom_call.1} parent=31 // pred_check_branch
          %196 = sbr.rel (%p194) target = $region44
        $region43: #{tpu_custom_call.1} parent=31 // pred_region
          %197 = dma.done [#allocation6], 1024
        $region44: #{tpu_custom_call.1} parent=31 // pred_fallthru
          _
        %s198 = sand.u32 %s29, 1
        %s199 = scalar_lea.sflag [#allocation3], %s198
        %s200 = sand.u32 %s29, 1
        %s201 = smul.addr %s200, 56
        %s202 = scalar_lea.vmem [#allocation2], %s201
        %p203 = pneg %p42
        %p204 = pneg %p39
        %p205 = pneg %p63
        %p206 = pneg %p60
        %p207 = pneg %p84
        %p208 = pneg %p81
        %p209 = pneg %p110
        %p210 = pneg %p107
        %s211 = sand.u32 %s97, 1
        %s212 = scalar_lea.sflag [#allocation4], %s211
        %s213 = sand.u32 %s97, 1
        %s214 = smul.addr %s213, 8
        %s215 = scalar_lea.vmem [#allocation8], %s214
        %v217 = vld [vmem:[%s185] sm:$0xff]
        %v218 = vld [vmem:[%s185 + $0x8] sm:$0xff]
        %v219 = vld [vmem:[%s185 + $0x10] sm:$0xff]
        %v220 = vld [vmem:[%s185 + $0x18] sm:$0xff]
        %v221 = vld [vmem:[%s185 + $0x20] sm:$0xff]
        %v222 = vld [vmem:[%s185 + $0x28] sm:$0xff]
        %v223 = vld [vmem:[%s185 + $0x30] sm:$0xff]
        %v224 = vpack.c.bf16 %v217, %v217
        %v225 = vpack.c.bf16 %v218, %v218
        %v226 = vpack.c.bf16 %v219, %v219
        %v227 = vpack.c.bf16 %v220, %v220
        %v228 = vpack.c.bf16 %v221, %v221
        %v229 = vpack.c.bf16 %v222, %v222
        %v230 = vpack.c.bf16 %v223, %v223
        %v231 = vld [vmem:[#allocation5] sm:$0xf]
        %v232 = vld [vmem:[#allocation5 + $0x4] sm:$0xf]
        %v233 = vld [vmem:[#allocation5 + $0x8] sm:$0xf]
        %v234 = vld [vmem:[#allocation5 + $0xc] sm:$0xf]
        %v235 = vld [vmem:[#allocation5 + $0x10] sm:$0xf]
        %v236 = vld [vmem:[#allocation5 + $0x14] sm:$0xf]
        %v237 = vld [vmem:[#allocation5 + $0x18] sm:$0xf]
        %v238 = vld [vmem:[#allocation5 + $0x1c] sm:$0xf]
        %v239 = vld [vmem:[#allocation5 + $0x20] sm:$0xf]
        %v240 = vld [vmem:[#allocation5 + $0x24] sm:$0xf]
        %v241 = vld [vmem:[#allocation5 + $0x28] sm:$0xf]
        %v242 = vld [vmem:[#allocation5 + $0x2c] sm:$0xf]
        %v243 = vld [vmem:[#allocation5 + $0x30] sm:$0xf]
        %v244 = vld [vmem:[#allocation5 + $0x34] sm:$0xf]
        %v245 = vld [vmem:[#allocation5 + $0x38] sm:$0xf]
        %v246 = vld [vmem:[#allocation5 + $0x3c] sm:$0xf]
        %v247 = vld [vmem:[#allocation5 + $0x40] sm:$0xf]
        %v248 = vld [vmem:[#allocation5 + $0x44] sm:$0xf]
        %v249 = vld [vmem:[#allocation5 + $0x48] sm:$0xf]
        %v250 = vld [vmem:[#allocation5 + $0x4c] sm:$0xf]
        %v251 = vld [vmem:[#allocation5 + $0x50] sm:$0xf]
        %v252 = vld [vmem:[#allocation5 + $0x54] sm:$0xf]
        %v253 = vld [vmem:[#allocation5 + $0x58] sm:$0xf]
        %v254 = vld [vmem:[#allocation5 + $0x5c] sm:$0xf]
        %v255 = vld [vmem:[#allocation5 + $0x60] sm:$0xf]
        %v256 = vld [vmem:[#allocation5 + $0x64] sm:$0xf]
        %v257 = vld [vmem:[#allocation5 + $0x68] sm:$0xf]
        %v258 = vld [vmem:[#allocation5 + $0x6c] sm:$0xf]
        %v259 = vld [vmem:[#allocation5 + $0x70] sm:$0xf]
        %v260 = vld [vmem:[#allocation5 + $0x74] sm:$0xf]
        %v261 = vld [vmem:[#allocation5 + $0x78] sm:$0xf]
        %v262 = vld [vmem:[#allocation5 + $0x7c] sm:$0xf]
        %v263 = vld [vmem:[#allocation5 + $0x80] sm:$0xf]
        %v264 = vld [vmem:[#allocation5 + $0x84] sm:$0xf]
        %v265 = vld [vmem:[#allocation5 + $0x88] sm:$0xf]
        %v266 = vld [vmem:[#allocation5 + $0x8c] sm:$0xf]
        %v267 = vld [vmem:[#allocation5 + $0x90] sm:$0xf]
        %v268 = vld [vmem:[#allocation5 + $0x94] sm:$0xf]
        %v269 = vld [vmem:[#allocation5 + $0x98] sm:$0xf]
        %v270 = vld [vmem:[#allocation5 + $0x9c] sm:$0xf]
        %v271 = vld [vmem:[#allocation5 + $0xa0] sm:$0xf]
        %v272 = vld [vmem:[#allocation5 + $0xa4] sm:$0xf]
        %v273 = vld [vmem:[#allocation5 + $0xa8] sm:$0xf]
        %v274 = vld [vmem:[#allocation5 + $0xac] sm:$0xf]
        %v275 = vld [vmem:[#allocation5 + $0xb0] sm:$0xf]
        %v276 = vld [vmem:[#allocation5 + $0xb4] sm:$0xf]
        %v277 = vld [vmem:[#allocation5 + $0xb8] sm:$0xf]
        %v278 = vld [vmem:[#allocation5 + $0xbc] sm:$0xf]
        %v279 = vld [vmem:[#allocation5 + $0xc0] sm:$0xf]
        %v280 = vld [vmem:[#allocation5 + $0xc4] sm:$0xf]
        %v281 = vld [vmem:[#allocation5 + $0xc8] sm:$0xf]
        %v282 = vld [vmem:[#allocation5 + $0xcc] sm:$0xf]
        %v283 = vld [vmem:[#allocation5 + $0xd0] sm:$0xf]
        %v284 = vld [vmem:[#allocation5 + $0xd4] sm:$0xf]
        %v285 = vld [vmem:[#allocation5 + $0xd8] sm:$0xf]
        %v286 = vld [vmem:[#allocation5 + $0xdc] sm:$0xf]
        %v287 = vld [vmem:[#allocation5 + $0xe0] sm:$0xf]
        %v288 = vld [vmem:[#allocation5 + $0xe4] sm:$0xf]
        %v289 = vld [vmem:[#allocation5 + $0xe8] sm:$0xf]
        %v290 = vld [vmem:[#allocation5 + $0xec] sm:$0xf]
        %v291 = vld [vmem:[#allocation5 + $0xf0] sm:$0xf]
        %v292 = vld [vmem:[#allocation5 + $0xf4] sm:$0xf]
        %v293 = vld [vmem:[#allocation5 + $0xf8] sm:$0xf]
        %v294 = vld [vmem:[#allocation5 + $0xfc] sm:$0xf]
        %v295 = vld [vmem:[#allocation5 + $0x100] sm:$0xf]
        %v296 = vld [vmem:[#allocation5 + $0x104] sm:$0xf]
        %v297 = vld [vmem:[#allocation5 + $0x108] sm:$0xf]
        %v298 = vld [vmem:[#allocation5 + $0x10c] sm:$0xf]
        %v299 = vld [vmem:[#allocation5 + $0x110] sm:$0xf]
        %v300 = vld [vmem:[#allocation5 + $0x114] sm:$0xf]
        %v301 = vld [vmem:[#allocation5 + $0x118] sm:$0xf]
        %v302 = vld [vmem:[#allocation5 + $0x11c] sm:$0xf]
        %v303 = vld [vmem:[#allocation5 + $0x120] sm:$0xf]
        %v304 = vld [vmem:[#allocation5 + $0x124] sm:$0xf]
        %v305 = vld [vmem:[#allocation5 + $0x128] sm:$0xf]
        %v306 = vld [vmem:[#allocation5 + $0x12c] sm:$0xf]
        %v307 = vld [vmem:[#allocation5 + $0x130] sm:$0xf]
        %v308 = vld [vmem:[#allocation5 + $0x134] sm:$0xf]
        %v309 = vld [vmem:[#allocation5 + $0x138] sm:$0xf]
        %v310 = vld [vmem:[#allocation5 + $0x13c] sm:$0xf]
        %v311 = vld [vmem:[#allocation5 + $0x140] sm:$0xf]
        %v312 = vld [vmem:[#allocation5 + $0x144] sm:$0xf]
        %v313 = vld [vmem:[#allocation5 + $0x148] sm:$0xf]
        %v314 = vld [vmem:[#allocation5 + $0x14c] sm:$0xf]
        %v315 = vld [vmem:[#allocation5 + $0x150] sm:$0xf]
        %v316 = vld [vmem:[#allocation5 + $0x154] sm:$0xf]
        %v317 = vld [vmem:[#allocation5 + $0x158] sm:$0xf]
        %v318 = vld [vmem:[#allocation5 + $0x15c] sm:$0xf]
        %v319 = vld [vmem:[#allocation5 + $0x160] sm:$0xf]
        %v320 = vld [vmem:[#allocation5 + $0x164] sm:$0xf]
        %v321 = vld [vmem:[#allocation5 + $0x168] sm:$0xf]
        %v322 = vld [vmem:[#allocation5 + $0x16c] sm:$0xf]
        %v323 = vld [vmem:[#allocation5 + $0x170] sm:$0xf]
        %v324 = vld [vmem:[#allocation5 + $0x174] sm:$0xf]
        %v325 = vld [vmem:[#allocation5 + $0x178] sm:$0xf]
        %v326 = vld [vmem:[#allocation5 + $0x17c] sm:$0xf]
        %v327 = vld [vmem:[#allocation5 + $0x180] sm:$0xf]
        %v328 = vld [vmem:[#allocation5 + $0x184] sm:$0xf]
        %v427 = vunpack.c.l.b16 %v231
        %v428 = vunpack.c.l.b16 %v232
        %v429 = vunpack.c.l.b16 %v233
        %v430 = vunpack.c.l.b16 %v234
        %v431 = vunpack.c.l.b16 %v235
        %v432 = vunpack.c.l.b16 %v236
        %v433 = vunpack.c.l.b16 %v237
        %v434 = vunpack.c.l.b16 %v238
        %v435 = vunpack.c.l.b16 %v239
        %v436 = vunpack.c.l.b16 %v240
        %v437 = vunpack.c.l.b16 %v241
        %v438 = vunpack.c.l.b16 %v242
        %v439 = vunpack.c.l.b16 %v243
        %v440 = vunpack.c.l.b16 %v244
        %v441 = vunpack.c.l.b16 %v245
        %v442 = vunpack.c.l.b16 %v246
        %v443 = vunpack.c.l.b16 %v247
        %v444 = vunpack.c.l.b16 %v248
        %v445 = vunpack.c.l.b16 %v249
        %v446 = vunpack.c.l.b16 %v250
        %v447 = vunpack.c.l.b16 %v251
        %v448 = vunpack.c.l.b16 %v252
        %v449 = vunpack.c.l.b16 %v253
        %v450 = vunpack.c.l.b16 %v254
        %v451 = vunpack.c.l.b16 %v255
        %v452 = vunpack.c.l.b16 %v256
        %v453 = vunpack.c.l.b16 %v257
        %v454 = vunpack.c.l.b16 %v258
        %v455 = vunpack.c.l.b16 %v259
        %v456 = vunpack.c.l.b16 %v260
        %v457 = vunpack.c.l.b16 %v261
        %v458 = vunpack.c.l.b16 %v262
        %v459 = vunpack.c.l.b16 %v263
        %v460 = vunpack.c.l.b16 %v264
        %v461 = vunpack.c.l.b16 %v265
        %v462 = vunpack.c.l.b16 %v266
        %v463 = vunpack.c.l.b16 %v267
        %v464 = vunpack.c.l.b16 %v268
        %v465 = vunpack.c.l.b16 %v269
        %v466 = vunpack.c.l.b16 %v270
        %v467 = vunpack.c.l.b16 %v271
        %v468 = vunpack.c.l.b16 %v272
        %v469 = vunpack.c.l.b16 %v273
        %v470 = vunpack.c.l.b16 %v274
        %v471 = vunpack.c.l.b16 %v275
        %v472 = vunpack.c.l.b16 %v276
        %v473 = vunpack.c.l.b16 %v277
        %v474 = vunpack.c.l.b16 %v278
        %v475 = vunpack.c.l.b16 %v279
        %v476 = vunpack.c.l.b16 %v280
        %v477 = vunpack.c.l.b16 %v281
        %v478 = vunpack.c.l.b16 %v282
        %v479 = vunpack.c.l.b16 %v283
        %v480 = vunpack.c.l.b16 %v284
        %v481 = vunpack.c.l.b16 %v285
        %v482 = vunpack.c.l.b16 %v286
        %v483 = vunpack.c.l.b16 %v287
        %v484 = vunpack.c.l.b16 %v288
        %v485 = vunpack.c.l.b16 %v289
        %v486 = vunpack.c.l.b16 %v290
        %v487 = vunpack.c.l.b16 %v291
        %v488 = vunpack.c.l.b16 %v292
        %v489 = vunpack.c.l.b16 %v293
        %v490 = vunpack.c.l.b16 %v294
        %v491 = vunpack.c.l.b16 %v295
        %v492 = vunpack.c.l.b16 %v296
        %v493 = vunpack.c.l.b16 %v297
        %v494 = vunpack.c.l.b16 %v298
        %v495 = vunpack.c.l.b16 %v299
        %v496 = vunpack.c.l.b16 %v300
        %v497 = vunpack.c.l.b16 %v301
        %v498 = vunpack.c.l.b16 %v302
        %v499 = vunpack.c.l.b16 %v303
        %v500 = vunpack.c.l.b16 %v304
        %v501 = vunpack.c.l.b16 %v305
        %v502 = vunpack.c.l.b16 %v306
        %v503 = vunpack.c.l.b16 %v307
        %v504 = vunpack.c.l.b16 %v308
        %v505 = vunpack.c.l.b16 %v309
        %v506 = vunpack.c.l.b16 %v310
        %v507 = vunpack.c.l.b16 %v311
        %v508 = vunpack.c.l.b16 %v312
        %v509 = vunpack.c.l.b16 %v313
        %v510 = vunpack.c.l.b16 %v314
        %v511 = vunpack.c.l.b16 %v315
        %v512 = vunpack.c.l.b16 %v316
        %v513 = vunpack.c.l.b16 %v317
        %v514 = vunpack.c.l.b16 %v318
        %v515 = vunpack.c.l.b16 %v319
        %v516 = vunpack.c.l.b16 %v320
        %v517 = vunpack.c.l.b16 %v321
        %v518 = vunpack.c.l.b16 %v322
        %v519 = vunpack.c.l.b16 %v323
        %v520 = vunpack.c.l.b16 %v324
        %v521 = vunpack.c.l.b16 %v325
        %v522 = vunpack.c.l.b16 %v326
        %v523 = vunpack.c.l.b16 %v327
        %v524 = vunpack.c.l.b16 %v328
        %v525 = vpack.c.b16 %v428, %v427
        %v526 = vpack.c.b16 %v430, %v429
        %v527 = vpack.c.b16 %v432, %v431
        %v528 = vpack.c.b16 %v434, %v433
        %v529 = vpack.c.b16 %v436, %v435
        %v530 = vpack.c.b16 %v438, %v437
        %v531 = vpack.c.b16 %v440, %v439
        %v532 = vpack.c.b16 %v442, %v441
        %v533 = vpack.c.b16 %v444, %v443
        %v534 = vpack.c.b16 %v446, %v445
        %v535 = vpack.c.b16 %v448, %v447
        %v536 = vpack.c.b16 %v450, %v449
        %v537 = vpack.c.b16 %v452, %v451
        %v538 = vpack.c.b16 %v454, %v453
        %v539 = vpack.c.b16 %v456, %v455
        %v540 = vpack.c.b16 %v458, %v457
        %v541 = vpack.c.b16 %v460, %v459
        %v542 = vpack.c.b16 %v462, %v461
        %v543 = vpack.c.b16 %v464, %v463
        %v544 = vpack.c.b16 %v466, %v465
        %v545 = vpack.c.b16 %v468, %v467
        %v546 = vpack.c.b16 %v470, %v469
        %v547 = vpack.c.b16 %v472, %v471
        %v548 = vpack.c.b16 %v474, %v473
        %v549 = vpack.c.b16 %v476, %v475
        %v550 = vpack.c.b16 %v478, %v477
        %v551 = vpack.c.b16 %v480, %v479
        %v552 = vpack.c.b16 %v482, %v481
        %v553 = vpack.c.b16 %v484, %v483
        %v554 = vpack.c.b16 %v486, %v485
        %v555 = vpack.c.b16 %v488, %v487
        %v556 = vpack.c.b16 %v490, %v489
        %v557 = vpack.c.b16 %v492, %v491
        %v558 = vpack.c.b16 %v494, %v493
        %v559 = vpack.c.b16 %v496, %v495
        %v560 = vpack.c.b16 %v498, %v497
        %v561 = vpack.c.b16 %v500, %v499
        %v562 = vpack.c.b16 %v502, %v501
        %v563 = vpack.c.b16 %v504, %v503
        %v564 = vpack.c.b16 %v506, %v505
        %v565 = vpack.c.b16 %v508, %v507
        %v566 = vpack.c.b16 %v510, %v509
        %v567 = vpack.c.b16 %v512, %v511
        %v568 = vpack.c.b16 %v514, %v513
        %v569 = vpack.c.b16 %v516, %v515
        %v570 = vpack.c.b16 %v518, %v517
        %v571 = vpack.c.b16 %v520, %v519
        %v572 = vpack.c.b16 %v522, %v521
        %v573 = vpack.c.b16 %v524, %v523
        %vm623 = vcmask 130048
        %v625 = vsel %vm623, %v230, 0
        %627 = vmatprep.subr.bf16.mxu0 0
        %628 = vmatpush1.bf16.msra.mxu0 %v532
        %629 = vmatprep.subr.bf16.mxu0 0
        %630 = vmatpush1.bf16.msra.mxu0 %v531
        %631 = vmatprep.subr.bf16.mxu0 0
        %632 = vmatpush1.bf16.msra.mxu0 %v530
        %633 = vmatprep.subr.bf16.mxu0 0
        %634 = vmatpush1.bf16.msra.mxu0 %v529
        %635 = vmatprep.subr.bf16.mxu0 0
        %636 = vmatpush1.bf16.msra.mxu0 %v528
        %637 = vmatprep.subr.bf16.mxu0 0
        %638 = vmatpush1.bf16.msra.mxu0 %v527
        %639 = vmatprep.subr.bf16.mxu0 0
        %640 = vmatpush1.bf16.msra.mxu0 %v526
        %641 = vmatprep.subr.bf16.mxu0 0
        %642 = vmatpush1.bf16.msra.mxu0 %v525
        %643 = vmatprep.subr.bf16.mxu0 0
        %644 = vmatpush2.bf16.msra.mxu0 %v540
        %645 = vmatprep.subr.bf16.mxu0 0
        %646 = vmatpush2.bf16.msra.mxu0 %v539
        %647 = vmatprep.subr.bf16.mxu0 0
        %648 = vmatpush2.bf16.msra.mxu0 %v538
        %649 = vmatprep.subr.bf16.mxu0 0
        %650 = vmatpush2.bf16.msra.mxu0 %v537
        %651 = vmatprep.subr.bf16.mxu0 0
        %652 = vmatpush2.bf16.msra.mxu0 %v536
        %653 = vmatprep.subr.bf16.mxu0 0
        %654 = vmatpush2.bf16.msra.mxu0 %v535
        %655 = vmatprep.subr.bf16.mxu0 0
        %656 = vmatpush2.bf16.msra.mxu0 %v534
        %657 = vmatprep.subr.bf16.mxu0 0
        %658 = vmatpush2.bf16.msra.mxu0 %v533
        %659 = vmatprep.mubr.bf16.mxu0 %v225
        %660 = vmatmul.mubr.bf16.gmra.mxu0 %v224
        %v661 = vpop.f32.mrf.mxu0
        %v662 = vadd.f32 0.0, %v661
        %v663 = vpop.f32.mrf.mxu0
        %v664 = vpop.f32.mrf.mxu0
        %v665 = vpop.f32.mrf.mxu0
        %666 = vdwg.mxu0
        %667 = vmatprep.subr.bf16.mxu0 0
        %668 = vmatpush1.bf16.msra.mxu0 %v548
        %669 = vmatprep.subr.bf16.mxu0 0
        %670 = vmatpush1.bf16.msra.mxu0 %v547
        %671 = vmatprep.subr.bf16.mxu0 0
        %672 = vmatpush1.bf16.msra.mxu0 %v546
        %673 = vmatprep.subr.bf16.mxu0 0
        %674 = vmatpush1.bf16.msra.mxu0 %v545
        %675 = vmatprep.subr.bf16.mxu0 0
        %676 = vmatpush1.bf16.msra.mxu0 %v544
        %677 = vmatprep.subr.bf16.mxu0 0
        %678 = vmatpush1.bf16.msra.mxu0 %v543
        %679 = vmatprep.subr.bf16.mxu0 0
        %680 = vmatpush1.bf16.msra.mxu0 %v542
        %681 = vmatprep.subr.bf16.mxu0 0
        %682 = vmatpush1.bf16.msra.mxu0 %v541
        %683 = vmatprep.subr.bf16.mxu0 0
        %684 = vmatpush2.bf16.msra.mxu0 %v556
        %685 = vmatprep.subr.bf16.mxu0 0
        %686 = vmatpush2.bf16.msra.mxu0 %v555
        %687 = vmatprep.subr.bf16.mxu0 0
        %688 = vmatpush2.bf16.msra.mxu0 %v554
        %689 = vmatprep.subr.bf16.mxu0 0
        %690 = vmatpush2.bf16.msra.mxu0 %v553
        %691 = vmatprep.subr.bf16.mxu0 0
        %692 = vmatpush2.bf16.msra.mxu0 %v552
        %693 = vmatprep.subr.bf16.mxu0 0
        %694 = vmatpush2.bf16.msra.mxu0 %v551
        %695 = vmatprep.subr.bf16.mxu0 0
        %696 = vmatpush2.bf16.msra.mxu0 %v550
        %697 = vmatprep.subr.bf16.mxu0 0
        %698 = vmatpush2.bf16.msra.mxu0 %v549
        %699 = vmatprep.mubr.bf16.mxu0 %v227
        %700 = vmatmul.mubr.bf16.gmra.mxu0 %v226
        %v701 = vpop.f32.mrf.mxu0
        %v702 = vadd.f32 %v662, %v701
        %v703 = vpop.f32.mrf.mxu0
        %v704 = vpop.f32.mrf.mxu0
        %v705 = vpop.f32.mrf.mxu0
        %706 = vdwg.mxu0
        %707 = vmatprep.subr.bf16.mxu0 0
        %708 = vmatpush1.bf16.msra.mxu0 %v564
        %709 = vmatprep.subr.bf16.mxu0 0
        %710 = vmatpush1.bf16.msra.mxu0 %v563
        %711 = vmatprep.subr.bf16.mxu0 0
        %712 = vmatpush1.bf16.msra.mxu0 %v562
        %713 = vmatprep.subr.bf16.mxu0 0
        %714 = vmatpush1.bf16.msra.mxu0 %v561
        %715 = vmatprep.subr.bf16.mxu0 0
        %716 = vmatpush1.bf16.msra.mxu0 %v560
        %717 = vmatprep.subr.bf16.mxu0 0
        %718 = vmatpush1.bf16.msra.mxu0 %v559
        %719 = vmatprep.subr.bf16.mxu0 0
        %720 = vmatpush1.bf16.msra.mxu0 %v558
        %721 = vmatprep.subr.bf16.mxu0 0
        %722 = vmatpush1.bf16.msra.mxu0 %v557
        %723 = vmatprep.subr.bf16.mxu0 0
        %724 = vmatpush2.bf16.msra.mxu0 %v572
        %725 = vmatprep.subr.bf16.mxu0 0
        %726 = vmatpush2.bf16.msra.mxu0 %v571
        %727 = vmatprep.subr.bf16.mxu0 0
        %728 = vmatpush2.bf16.msra.mxu0 %v570
        %729 = vmatprep.subr.bf16.mxu0 0
        %730 = vmatpush2.bf16.msra.mxu0 %v569
        %731 = vmatprep.subr.bf16.mxu0 0
        %732 = vmatpush2.bf16.msra.mxu0 %v568
        %733 = vmatprep.subr.bf16.mxu0 0
        %734 = vmatpush2.bf16.msra.mxu0 %v567
        %735 = vmatprep.subr.bf16.mxu0 0
        %736 = vmatpush2.bf16.msra.mxu0 %v566
        %737 = vmatprep.subr.bf16.mxu0 0
        %738 = vmatpush2.bf16.msra.mxu0 %v565
        %739 = vmatprep.mubr.bf16.mxu0 %v229
        %740 = vmatmul.mubr.bf16.gmra.mxu0 %v228
        %v741 = vpop.f32.mrf.mxu0
        %v742 = vadd.f32 %v702, %v741
        %v743 = vpop.f32.mrf.mxu0
        %v744 = vpop.f32.mrf.mxu0
        %v745 = vpop.f32.mrf.mxu0
        %746 = vdwg.mxu0
        %747 = vmatprep.subr.bf16.mxu0 0
        %748 = vmatpush1.bf16.msra.mxu0 0
        %749 = vmatprep.subr.bf16.mxu0 0
        %750 = vmatpush1.bf16.msra.mxu0 0
        %751 = vmatprep.subr.bf16.mxu0 0
        %752 = vmatpush1.bf16.msra.mxu0 0
        %753 = vmatprep.subr.bf16.mxu0 0
        %754 = vmatpush1.bf16.msra.mxu0 0
        %755 = vmatprep.subr.bf16.mxu0 0
        %756 = vmatpush1.bf16.msra.mxu0 0
        %757 = vmatprep.subr.bf16.mxu0 0
        %758 = vmatpush1.bf16.msra.mxu0 0
        %759 = vmatprep.subr.bf16.mxu0 0
        %760 = vmatpush1.bf16.msra.mxu0 0
        %761 = vmatprep.subr.bf16.mxu0 0
        %762 = vmatpush1.bf16.msra.mxu0 %v573
        %763 = vmatprep.subr.bf16.mxu0 0
        %764 = vmatpush2.bf16.msra.mxu0 0
        %765 = vmatprep.subr.bf16.mxu0 0
        %766 = vmatpush2.bf16.msra.mxu0 0
        %767 = vmatprep.subr.bf16.mxu0 0
        %768 = vmatpush2.bf16.msra.mxu0 0
        %769 = vmatprep.subr.bf16.mxu0 0
        %770 = vmatpush2.bf16.msra.mxu0 0
        %771 = vmatprep.subr.bf16.mxu0 0
        %772 = vmatpush2.bf16.msra.mxu0 0
        %773 = vmatprep.subr.bf16.mxu0 0
        %774 = vmatpush2.bf16.msra.mxu0 0
        %775 = vmatprep.subr.bf16.mxu0 0
        %776 = vmatpush2.bf16.msra.mxu0 0
        %777 = vmatprep.subr.bf16.mxu0 0
        %778 = vmatpush2.bf16.msra.mxu0 0
        %779 = vmatprep.mubr.bf16.mxu0 0
        %780 = vmatmul.mubr.bf16.gmra.mxu0 %v625
        %v781 = vpop.f32.mrf.mxu0
        %v782 = vadd.f32 %v742, %v781
        %v783 = vpop.f32.mrf.mxu0
        %v784 = vpop.f32.mrf.mxu0
        %v785 = vpop.f32.mrf.mxu0
        %786 = vdwg.mxu0
        %v787 = vmax.f32 %v782, 0.0
        %v788 = vpack.c.bf16 %v787, %v787
        %v789 = vld [vmem:[#allocation7] sm:$0xf]
        %v790 = vld [vmem:[#allocation7 + $0x4] sm:$0xf]
        %v791 = vld [vmem:[#allocation7 + $0x8] sm:$0xf]
        %v792 = vld [vmem:[#allocation7 + $0xc] sm:$0xf]
        %v793 = vld [vmem:[#allocation7 + $0x10] sm:$0xf]
        %v794 = vld [vmem:[#allocation7 + $0x14] sm:$0xf]
        %v795 = vld [vmem:[#allocation7 + $0x18] sm:$0xf]
        %v796 = vld [vmem:[#allocation7 + $0x1c] sm:$0xf]
        %v797 = vld [vmem:[#allocation7 + $0x20] sm:$0xf]
        %v798 = vld [vmem:[#allocation7 + $0x24] sm:$0xf]
        %v799 = vld [vmem:[#allocation7 + $0x28] sm:$0xf]
        %v800 = vld [vmem:[#allocation7 + $0x2c] sm:$0xf]
        %v801 = vld [vmem:[#allocation7 + $0x30] sm:$0xf]
        %v802 = vld [vmem:[#allocation7 + $0x34] sm:$0xf]
        %v803 = vld [vmem:[#allocation7 + $0x38] sm:$0xf]
        %v804 = vld [vmem:[#allocation7 + $0x3c] sm:$0xf]
        %v821 = vunpack.c.l.b16 %v789
        %v822 = vunpack.c.l.b16 %v790
        %v823 = vunpack.c.l.b16 %v791
        %v824 = vunpack.c.l.b16 %v792
        %v825 = vunpack.c.l.b16 %v793
        %v826 = vunpack.c.l.b16 %v794
        %v827 = vunpack.c.l.b16 %v795
        %v828 = vunpack.c.l.b16 %v796
        %v829 = vunpack.c.l.b16 %v797
        %v830 = vunpack.c.l.b16 %v798
        %v831 = vunpack.c.l.b16 %v799
        %v832 = vunpack.c.l.b16 %v800
        %v833 = vunpack.c.l.b16 %v801
        %v834 = vunpack.c.l.b16 %v802
        %v835 = vunpack.c.l.b16 %v803
        %v836 = vunpack.c.l.b16 %v804
        %v837 = vpack.c.b16 %v822, %v821
        %v838 = vpack.c.b16 %v824, %v823
        %v839 = vpack.c.b16 %v826, %v825
        %v840 = vpack.c.b16 %v828, %v827
        %v841 = vpack.c.b16 %v830, %v829
        %v842 = vpack.c.b16 %v832, %v831
        %v843 = vpack.c.b16 %v834, %v833
        %v844 = vpack.c.b16 %v836, %v835
        %853 = vmatprep.subr.bf16.mxu0 0
        %854 = vmatpush1.bf16.msra.mxu0 %v844
        %855 = vmatprep.subr.bf16.mxu0 0
        %856 = vmatpush1.bf16.msra.mxu0 %v843
        %857 = vmatprep.subr.bf16.mxu0 0
        %858 = vmatpush1.bf16.msra.mxu0 %v842
        %859 = vmatprep.subr.bf16.mxu0 0
        %860 = vmatpush1.bf16.msra.mxu0 %v841
        %861 = vmatprep.subr.bf16.mxu0 0
        %862 = vmatpush1.bf16.msra.mxu0 %v840
        %863 = vmatprep.subr.bf16.mxu0 0
        %864 = vmatpush1.bf16.msra.mxu0 %v839
        %865 = vmatprep.subr.bf16.mxu0 0
        %866 = vmatpush1.bf16.msra.mxu0 %v838
        %867 = vmatprep.subr.bf16.mxu0 0
        %868 = vmatpush1.bf16.msra.mxu0 %v837
        %869 = vmatprep.subr.bf16.mxu0 0
        %870 = vmatpush2.bf16.msra.mxu0 0
        %871 = vmatprep.subr.bf16.mxu0 0
        %872 = vmatpush2.bf16.msra.mxu0 0
        %873 = vmatprep.subr.bf16.mxu0 0
        %874 = vmatpush2.bf16.msra.mxu0 0
        %875 = vmatprep.subr.bf16.mxu0 0
        %876 = vmatpush2.bf16.msra.mxu0 0
        %877 = vmatprep.subr.bf16.mxu0 0
        %878 = vmatpush2.bf16.msra.mxu0 0
        %879 = vmatprep.subr.bf16.mxu0 0
        %880 = vmatpush2.bf16.msra.mxu0 0
        %881 = vmatprep.subr.bf16.mxu0 0
        %882 = vmatpush2.bf16.msra.mxu0 0
        %883 = vmatprep.subr.bf16.mxu0 0
        %884 = vmatpush2.bf16.msra.mxu0 0
        %885 = vmatprep.mubr.bf16.mxu0 0
        %886 = vmatmul.mubr.bf16.gmra.mxu0 %v788
        %v887 = vpop.f32.mrf.mxu0
        %v888 = vadd.f32 0.0, %v887
        %v889 = vpop.f32.mrf.mxu0
        %v890 = vpop.f32.mrf.mxu0
        %v891 = vpop.f32.mrf.mxu0
        %892 = vdwg.mxu0
        %v893 = vlaneseq
        %v894 = vand.u32 %v893, 127
        %vm895 = vcmp.lt.s32.totalorder %v894, 10
        %v896 = vsel %vm895, %v888, -1e+30
        %897 = vmax.xlane.f32.xlu0 %v896
        %v898 = vpop.xlane.xlu0 %897
        %v899 = vsub.f32 %v896, %v898
        %v900 = vmul.f32 %v899, 1.442695
        %v901 = vpow.pop %v900
        %902 = vadd.xlane.f32.xlu0 %v901
        %v903 = vpop.xlane.xlu0 %902
        %v904 = vrcp.pop %v903
        %v905 = vmul.f32 %v901, %v904
        %906 = vst [vmem:[%s215] sm:$0xff] %v905
        %s907 = sand.u32 %s97, 1
        %s908 = scalar_lea.sflag [#allocation4], %s907
        %s909 = sand.u32 %s97, 1
        %s910 = smul.addr %s909, 8
        %s911 = scalar_lea.vmem [#allocation8], %s910
        // Predicated region
        $region45: #{tpu_custom_call.1} parent=31 // pred_check
          %p912 = pneg %p107
        $region46: #{tpu_custom_call.1} parent=31 // pred_check_branch
          %914 = sbr.rel (%p912) target = $region48
        $region47: #{tpu_custom_call.1} parent=31 // pred_region
          %s916 = ssub.s32 128, 128
          %917 = vsyncadd %s908, %s916
          %s918 = smul.addr %s21, 128
          %s919 = scalar_lea.hbm %s3, %s918
          %s921 = sshll.u32 %s911, 4
          %s922 = int_to_ptr.vmem [resolvable:$true] %s921
          %924 = dma.vmem_to_hbm [thread:$0]  %s922, 128, %s919, %s908
        $region48: #{tpu_custom_call.1} parent=31 // pred_fallthru
          _
      $region32: #{tpu_custom_call.1} parent=5 // pred_fallthru
        _
      %p925 = scmp.le.s32.totalorder 2, %s16
      // Predicated region
      $region49: #{tpu_custom_call.1} parent=5 // pred_check
        %p926 = pneg %p925
      $region50: #{tpu_custom_call.1} parent=5 // pred_check_branch
        %928 = sbr.rel (%p926) target = $region52
      $region51: #{tpu_custom_call.1} parent=5 // pred_region
        %s929 = ssub.s32 %s16, 2
        // Predicated region
        $region53: #{tpu_custom_call.1} parent=51 // pred_check
          %p930 = pneg %p113
        $region54: #{tpu_custom_call.1} parent=51 // pred_check_branch
          %932 = sbr.rel (%p930) target = $region56
        $region55: #{tpu_custom_call.1} parent=51 // pred_region
          %s933 = sand.u32 %s98, 1
          %s934 = scalar_lea.sflag [#allocation4], %s933
          %s935 = sand.u32 %s98, 1
          %s936 = smul.addr %s935, 8
          %s937 = scalar_lea.vmem [#allocation8], %s936
          %938 = dma.done %s934, 128
        $region56: #{tpu_custom_call.1} parent=51 // pred_fallthru
          _
      $region52: #{tpu_custom_call.1} parent=5 // pred_fallthru
        _
    $region6: #{tpu_custom_call.1} parent=1 // loop_footer
      %s20 = sadd.s32 1, %s16
    $region7: #{tpu_custom_call.1} parent=1 // loop_footer_branch
      %15 = sbr.rel target = $region3
    $region8: #{tpu_custom_call.1} parent=1 // loop_exit
      _
    %939 = vsyncpa [#allocation3], 1
    %s940 = scalar_lea.sflag [#allocation3], 1
    %941 = vsyncpa %s940, 1
    %942 = vsyncpa [#allocation6], 1
    %943 = vsyncpa [#allocation4], 1
    %s944 = scalar_lea.sflag [#allocation4], 1
    %945 = vsyncpa %s944, 1

</llo_original>
